<compile_context>
chip_gen: v5e
topology: v5e:2x2
jax: 0.10.0
libtpu: 0.0.40
codegen_flags: <defaults>
</compile_context>

<pallas_src>
from functools import partial

import numpy as np
import jax
import jax.numpy as jnp
from jax.experimental import pallas as pl
from jax.experimental.pallas import tpu as pltpu

FLOOR_NUM = 16
ELEV_FEAT = 16 + 16 + 1 + 1 + 16 + 16 + 16  # = 82


# ---------------------------------------------------------------------------
# Pallas kernel
# ---------------------------------------------------------------------------
def mlmodel_kernel(infos_ref,
                   w1f_ref, b1f_ref,          # fused encoder layer 1: (82,112),(1,112)
                   w2f_ref, b2f_ref,          # fused encoder layer 2: (112,120),(1,120)
                   emb_ref,                   # door embedding, padded: (4,120)
                   mw1_ref, mb1_ref,          # elev_mlp layer 1: (120,32),(1,32)
                   mw2_ref, mb2_ref,          # elev_mlp layer 2: (32,32),(1,32)
                   sw1_ref, sb1_ref,          # score layer 1: (E,32),(1,1)
                   sw2_ref, sb2_ref,          # score layer 2: (1,1),(1,1)
                   out_ref):                  # (TB, 1)
    E, TB, F = infos_ref.shape
    N = E * TB

    # Fold elevators into the batch (leading-dim merge; TB % 8 == 0 => free).
    x = infos_ref[...].reshape(N, F)                       # (N, 82)

    # Door embedding: 4 VPU selects against the pre-padded (4, 120) table.
    # (Out-of-range door values produce a zero embedding; PyTorch would raise.)
    door = x[:, 33:34].astype(jnp.int32)                   # trunc, like .long()
    emb = emb_ref[...]                                      # (4, 120)
    e_door = ((door == 0).astype(jnp.float32) * emb[0:1, :]
              + (door == 1).astype(jnp.float32) * emb[1:2, :]
              + (door == 2).astype(jnp.float32) * emb[2:3, :]
              + (door == 3).astype(jnp.float32) * emb[3:4, :])   # (N, 120)

    # Fused encoder layer 1 (block-diagonal over pos/dir/car/up/dn).
    h1 = jnp.maximum(
        jnp.dot(x, w1f_ref[...], preferred_element_type=jnp.float32)
        + b1f_ref[...], 0.0)                               # (N, 112)

    # Fused encoder layer 2; door columns (8:16) of the matmul are exactly 0,
    # so adding e_door splices the raw (no-ReLU) embedding into the features.
    feats = jnp.maximum(
        jnp.dot(h1, w2f_ref[...], preferred_element_type=jnp.float32)
        + b2f_ref[...], 0.0) + e_door                      # (N, 120)

    # elev_mlp: 120 -> 32 -> 32 with ReLU.
    h3 = jnp.maximum(
        jnp.dot(feats, mw1_ref[...], preferred_element_type=jnp.float32)
        + mb1_ref[...], 0.0)                               # (N, 32)
    elev_out = jnp.maximum(
        jnp.dot(h3, mw2_ref[...], preferred_element_type=jnp.float32)
        + mb2_ref[...], 0.0)                               # (N, 32)

    # Score head (hidden = 1): per-elevator weighted features, folded over E
    # with VPU adds, then a 32-lane reduction.  No N=1 MXU matmul.
    sw1 = sw1_ref[...]                                      # (E, 32)
    acc = None
    for e in range(E):                                      # tiny static loop
        t = elev_out[e * TB:(e + 1) * TB, :] * sw1[e:e + 1, :]   # (TB, 32)
        acc = t if acc is None else acc + t
    s = jnp.sum(acc, axis=-1, keepdims=True)                # (TB, 1)
    h = jnp.maximum(s + sb1_ref[...], 0.0)
    out_ref[...] = jnp.maximum(h * sw2_ref[...] + sb2_ref[...], 0.0)


# ---------------------------------------------------------------------------
# Deterministic parameter construction (orthogonal init, gain sqrt(2), bias 0)
# ---------------------------------------------------------------------------
def _orthogonal(key, fan_in, fan_out, gain):
    r, c = (fan_in, fan_out) if fan_in >= fan_out else (fan_out, fan_in)
    a = jax.random.normal(key, (r, c), dtype=jnp.float32)
    q, rr = jnp.linalg.qr(a)
    q = q * jnp.sign(jnp.diagonal(rr))
    if fan_in < fan_out:
        q = q.T
    return (gain * q).astype(jnp.float32)


def _mlp_params(key, in_dim, hid):
    g = float(np.sqrt(2.0))
    k1, k2 = jax.random.split(key)
    return (_orthogonal(k1, in_dim, hid, g), jnp.zeros((hid,), jnp.float32),
            _orthogonal(k2, hid, hid, g), jnp.zeros((hid,), jnp.float32))


def build_params(key, elev_num, floor_num=FLOOR_NUM):
    assert floor_num == FLOOR_NUM  # module hard-codes split([16,16,1,1,16,16,16])
    keys = jax.random.split(key, 8)
    params = {
        "pos": _mlp_params(keys[0], floor_num, 8),
        "dir": _mlp_params(keys[1], floor_num, 8),
        "car": _mlp_params(keys[2], floor_num, 32),
        "up": _mlp_params(keys[3], floor_num, 32),
        "dn": _mlp_params(keys[4], floor_num, 32),
        "emb": jax.random.normal(keys[5], (4, 8), dtype=jnp.float32),  # N(0,1)
        "mlp": _mlp_params(keys[6], 120, 32),
    }
    g = float(np.sqrt(2.0))
    ks1, ks2 = jax.random.split(keys[7])
    params["score"] = (_orthogonal(ks1, 32 * elev_num, 1, g),   # (32E, 1)
                       jnp.zeros((1,), jnp.float32),
                       _orthogonal(ks2, 1, 1, g),               # (1, 1)
                       jnp.zeros((1,), jnp.float32))
    return params


def pack_params(params, elev_num):
    """Pre-pack the per-encoder weights into block-diagonal fused matrices."""
    pw1, pb1, pw2, pb2 = params["pos"]
    dw1, db1, dw2, db2 = params["dir"]
    cw1, cb1, cw2, cb2 = params["car"]
    uw1, ub1, uw2, ub2 = params["up"]
    nw1, nb1, nw2, nb2 = params["dn"]
    emb = params["emb"]
    mw1, mb1, mw2, mb2 = params["mlp"]
    sw1, sb1, sw2, sb2 = params["score"]

    # Layer-1 fused weight: input cols -> hidden cols [pos 0:8 | dir 8:16 |
    # car 16:48 | up 48:80 | dn 80:112]; vol/door rows (32:34) stay zero.
    w1f = jnp.zeros((ELEV_FEAT, 112), jnp.float32)
    w1f = w1f.at[0:16, 0:8].set(pw1)
    w1f = w1f.at[16:32, 8:16].set(dw1)
    w1f = w1f.at[34:50, 16:48].set(cw1)
    w1f = w1f.at[50:66, 48:80].set(uw1)
    w1f = w1f.at[66:82, 80:112].set(nw1)
    b1f = jnp.concatenate([pb1, db1, cb1, ub1, nb1]).reshape(1, 112)

    # Layer-2 fused weight: hidden cols -> feature cols
    # [pos 0:8 | door 8:16 (zeros) | dir 16:24 | car 24:56 | up 56:88 | dn 88:120]
    w2f = jnp.zeros((112, 120), jnp.float32)
    w2f = w2f.at[0:8, 0:8].set(pw2)
    w2f = w2f.at[8:16, 16:24].set(dw2)
    w2f = w2f.at[16:48, 24:56].set(cw2)
    w2f = w2f.at[48:80, 56:88].set(uw2)
    w2f = w2f.at[80:112, 88:120].set(nw2)
    b2f = jnp.zeros((120,), jnp.float32)
    b2f = b2f.at[0:8].set(pb2).at[16:24].set(db2).at[24:56].set(cb2)
    b2f = b2f.at[56:88].set(ub2).at[88:120].set(nb2)
    b2f = b2f.reshape(1, 120)

    # Door embedding padded to land in feature cols 8:16.
    emb_pad = jnp.zeros((4, 120), jnp.float32).at[:, 8:16].set(emb)

    sw1_r = sw1[:, 0].reshape(elev_num, 32)                 # per-elevator slices

    return (w1f, b1f, w2f, b2f, emb_pad,
            mw1, mb1.reshape(1, 32), mw2, mb2.reshape(1, 32),
            sw1_r, sb1.reshape(1, 1), sw2, sb2.reshape(1, 1))


# ---------------------------------------------------------------------------
# Wrapper
# ---------------------------------------------------------------------------
def _round_up(x, m):
    return ((x + m - 1) // m) * m


def _resident_spec(arr):
    # Full-array block with a constant index map: DMA'd once, stays in VMEM.
    n = arr.ndim
    return pl.BlockSpec(arr.shape, lambda i, _n=n: (0,) * _n)


def mlmodel_forward(elev_infos, packed_params, tile_rows=512):
    E, B, F = elev_infos.shape
    assert F == ELEV_FEAT

    TB = min(int(tile_rows), _round_up(max(B, 1), 8))       # sublane-aligned tile
    B_pad = _round_up(B, TB)
    if B_pad != B:
        elev_infos = jnp.pad(elev_infos, ((0, 0), (0, B_pad - B), (0, 0)))
    grid = (B_pad // TB,)

    in_specs = [pl.BlockSpec((E, TB, F), lambda i: (0, i, 0))]
    in_specs += [_resident_spec(p) for p in packed_params]
    out_spec = pl.BlockSpec((TB, 1), lambda i: (i, 0))

    out = pl.pallas_call(
        mlmodel_kernel,
        out_shape=jax.ShapeDtypeStruct((B_pad, 1), jnp.float32),
        grid=grid,
        in_specs=in_specs,
        out_specs=out_spec,
        compiler_params=pltpu.CompilerParams(
            dimension_semantics=("parallel",),     # megacore split on v7x
            vmem_limit_bytes=32 * 1024 * 1024),    # fits v7x's 64 MiB VMEM too
    )(elev_infos, *packed_params)
    return out[:B]


# ---------------------------------------------------------------------------
# Pure-JAX reference that mirrors the PyTorch module (un-fused math).
# ---------------------------------------------------------------------------
def mlmodel_reference(elev_infos, params):
    def mlp(x, p):
        w1, b1, w2, b2 = p
        h = jnp.maximum(x @ w1 + b1, 0.0)
        return jnp.maximum(h @ w2 + b2, 0.0)

    outs = []
    for i in range(elev_infos.shape[0]):
        x = elev_infos[i]
        pos, dirv = x[:, 0:16], x[:, 16:32]
        door = x[:, 33].astype(jnp.int32)
        car, up, dn = x[:, 34:50], x[:, 50:66], x[:, 66:82]
        feats = jnp.concatenate(
            [mlp(pos, params["pos"]), params["emb"][door], mlp(dirv, params["dir"]),
             mlp(car, params["car"]), mlp(up, params["up"]), mlp(dn, params["dn"])],
            axis=-1)
        outs.append(mlp(feats, params["mlp"]))
    cat = jnp.concatenate(outs, axis=-1)
    sw1, sb1, sw2, sb2 = params["score"]
    h = jnp.maximum(cat @ sw1 + sb1, 0.0)
    return jnp.maximum(h @ sw2 + sb2, 0.0)


if __name__ == "__main__":
    elev_num, floor_num = 2, FLOOR_NUM

    root = jax.random.PRNGKey(0)
    k_params, k_x1, k_d1, k_x2, k_d2 = jax.random.split(root, 5)

    params = build_params(k_params, elev_num, floor_num)
    packed = pack_params(params, elev_num)

    def make_infos(kx, kd, batch):
        infos = jax.random.normal(kx, (elev_num, batch, ELEV_FEAT), dtype=jnp.float32)
        doors = jax.random.randint(kd, (elev_num, batch, 1), 0, 4).astype(jnp.float32)
        return infos.at[:, :, 33:34].set(doors)

    # Small case (single tile, padded batch).
    infos = make_infos(k_x1, k_d1, 2)
    score = mlmodel_forward(infos, packed)
    jax.block_until_ready(score)
    ref = mlmodel_reference(infos, params)
    np.testing.assert_allclose(np.asarray(score), np.asarray(ref), rtol=1e-2, atol=1e-2)
    assert score.shape == (2, 1)

    # Multi-tile grid + batch padding path (grid of 4 tiles, B padded 50 -> 64).
    infos2 = make_infos(k_x2, k_d2, 50)
    score2 = mlmodel_forward(infos2, packed, tile_rows=16)
    jax.block_until_ready(score2)
    ref2 = mlmodel_reference(infos2, params)
    np.testing.assert_allclose(np.asarray(score2), np.asarray(ref2), rtol=1e-2, atol=1e-2)
    assert score2.shape == (50, 1)

    print("KERNEL_OK")
</pallas_src>

<mosaic_0001>
module attributes {stable_mosaic.version = 11 : i64} {
  func.func @mlmodel_kernel(%arg0: i32, %arg1: memref<2x8x82xf32, #tpu.memory_space<vmem>>, %arg2: memref<82x112xf32, #tpu.memory_space<vmem>>, %arg3: memref<1x112xf32, #tpu.memory_space<vmem>>, %arg4: memref<112x120xf32, #tpu.memory_space<vmem>>, %arg5: memref<1x120xf32, #tpu.memory_space<vmem>>, %arg6: memref<4x120xf32, #tpu.memory_space<vmem>>, %arg7: memref<120x32xf32, #tpu.memory_space<vmem>>, %arg8: memref<1x32xf32, #tpu.memory_space<vmem>>, %arg9: memref<32x32xf32, #tpu.memory_space<vmem>>, %arg10: memref<1x32xf32, #tpu.memory_space<vmem>>, %arg11: memref<2x32xf32, #tpu.memory_space<vmem>>, %arg12: memref<1x1xf32, #tpu.memory_space<vmem>>, %arg13: memref<1x1xf32, #tpu.memory_space<vmem>>, %arg14: memref<1x1xf32, #tpu.memory_space<vmem>>, %arg15: memref<8x1xf32, #tpu.memory_space<vmem>>) attributes {dimension_semantics = [#tpu.dimension_semantics<parallel>], iteration_bounds = array<i64: 1>, scalar_prefetch = 0 : i64, scratch_operands = 0 : i64, tpu.core_type = #tpu.core_type<tc>, window_params = [{transform_indices = @transform_0, window_bounds = array<i64: 2, 8, 82>}, {pipeline_mode = #tpu.pipeline_mode<synchronous>, transform_indices = @transform_1, window_bounds = array<i64: 82, 112>}, {pipeline_mode = #tpu.pipeline_mode<synchronous>, transform_indices = @transform_2, window_bounds = array<i64: 1, 112>}, {pipeline_mode = #tpu.pipeline_mode<synchronous>, transform_indices = @transform_3, window_bounds = array<i64: 112, 120>}, {pipeline_mode = #tpu.pipeline_mode<synchronous>, transform_indices = @transform_4, window_bounds = array<i64: 1, 120>}, {pipeline_mode = #tpu.pipeline_mode<synchronous>, transform_indices = @transform_5, window_bounds = array<i64: 4, 120>}, {pipeline_mode = #tpu.pipeline_mode<synchronous>, transform_indices = @transform_6, window_bounds = array<i64: 120, 32>}, {pipeline_mode = #tpu.pipeline_mode<synchronous>, transform_indices = @transform_7, window_bounds = array<i64: 1, 32>}, {pipeline_mode = #tpu.pipeline_mode<synchronous>, transform_indices = @transform_8, window_bounds = array<i64: 32, 32>}, {pipeline_mode = #tpu.pipeline_mode<synchronous>, transform_indices = @transform_9, window_bounds = array<i64: 1, 32>}, {pipeline_mode = #tpu.pipeline_mode<synchronous>, transform_indices = @transform_10, window_bounds = array<i64: 2, 32>}, {pipeline_mode = #tpu.pipeline_mode<synchronous>, transform_indices = @transform_11, window_bounds = array<i64: 1, 1>}, {pipeline_mode = #tpu.pipeline_mode<synchronous>, transform_indices = @transform_12, window_bounds = array<i64: 1, 1>}, {pipeline_mode = #tpu.pipeline_mode<synchronous>, transform_indices = @transform_13, window_bounds = array<i64: 1, 1>}, {transform_indices = @transform_14, window_bounds = array<i64: 8, 1>}]} {
    %c0 = arith.constant 0 : index
    %c0_0 = arith.constant 0 : index
    %c0_1 = arith.constant 0 : index
    %0 = vector.load %arg1[%c0, %c0_0, %c0_1] : memref<2x8x82xf32, #tpu.memory_space<vmem>>, vector<2x8x82xf32>
    %1 = vector.shape_cast %0 : vector<2x8x82xf32> to vector<16x82xf32>
    %2 = vector.extract_strided_slice %1 {offsets = [0, 33], sizes = [16, 1], strides = [1, 1]} : vector<16x82xf32> to vector<16x1xf32>
    %3 = arith.fptosi %2 : vector<16x1xf32> to vector<16x1xi32>
    %c0_2 = arith.constant 0 : index
    %c0_3 = arith.constant 0 : index
    %4 = vector.load %arg6[%c0_2, %c0_3] : memref<4x120xf32, #tpu.memory_space<vmem>>, vector<4x120xf32>
    %c0_i32 = arith.constant 0 : i32
    %5 = vector.broadcast %c0_i32 : i32 to vector<16x1xi32>
    %6 = arith.cmpi eq, %3, %5 : vector<16x1xi32>
    %7 = arith.extui %6 : vector<16x1xi1> to vector<16x1xi32>
    %8 = arith.sitofp %7 : vector<16x1xi32> to vector<16x1xf32>
    %9 = vector.extract_strided_slice %4 {offsets = [0, 0], sizes = [1, 120], strides = [1, 1]} : vector<4x120xf32> to vector<1x120xf32>
    %10 = vector.broadcast %8 : vector<16x1xf32> to vector<16x120xf32>
    %11 = vector.broadcast %9 : vector<1x120xf32> to vector<16x120xf32>
    %12 = arith.mulf %10, %11 : vector<16x120xf32>
    %c1_i32 = arith.constant 1 : i32
    %13 = vector.broadcast %c1_i32 : i32 to vector<16x1xi32>
    %14 = arith.cmpi eq, %3, %13 : vector<16x1xi32>
    %15 = arith.extui %14 : vector<16x1xi1> to vector<16x1xi32>
    %16 = arith.sitofp %15 : vector<16x1xi32> to vector<16x1xf32>
    %17 = vector.extract_strided_slice %4 {offsets = [1, 0], sizes = [1, 120], strides = [1, 1]} : vector<4x120xf32> to vector<1x120xf32>
    %18 = vector.broadcast %16 : vector<16x1xf32> to vector<16x120xf32>
    %19 = vector.broadcast %17 : vector<1x120xf32> to vector<16x120xf32>
    %20 = arith.mulf %18, %19 : vector<16x120xf32>
    %21 = arith.addf %12, %20 : vector<16x120xf32>
    %c2_i32 = arith.constant 2 : i32
    %22 = vector.broadcast %c2_i32 : i32 to vector<16x1xi32>
    %23 = arith.cmpi eq, %3, %22 : vector<16x1xi32>
    %24 = arith.extui %23 : vector<16x1xi1> to vector<16x1xi32>
    %25 = arith.sitofp %24 : vector<16x1xi32> to vector<16x1xf32>
    %26 = vector.extract_strided_slice %4 {offsets = [2, 0], sizes = [1, 120], strides = [1, 1]} : vector<4x120xf32> to vector<1x120xf32>
    %27 = vector.broadcast %25 : vector<16x1xf32> to vector<16x120xf32>
    %28 = vector.broadcast %26 : vector<1x120xf32> to vector<16x120xf32>
    %29 = arith.mulf %27, %28 : vector<16x120xf32>
    %30 = arith.addf %21, %29 : vector<16x120xf32>
    %c3_i32 = arith.constant 3 : i32
    %31 = vector.broadcast %c3_i32 : i32 to vector<16x1xi32>
    %32 = arith.cmpi eq, %3, %31 : vector<16x1xi32>
    %33 = arith.extui %32 : vector<16x1xi1> to vector<16x1xi32>
    %34 = arith.sitofp %33 : vector<16x1xi32> to vector<16x1xf32>
    %35 = vector.extract_strided_slice %4 {offsets = [3, 0], sizes = [1, 120], strides = [1, 1]} : vector<4x120xf32> to vector<1x120xf32>
    %36 = vector.broadcast %34 : vector<16x1xf32> to vector<16x120xf32>
    %37 = vector.broadcast %35 : vector<1x120xf32> to vector<16x120xf32>
    %38 = arith.mulf %36, %37 : vector<16x120xf32>
    %39 = arith.addf %30, %38 : vector<16x120xf32>
    %c0_4 = arith.constant 0 : index
    %c0_5 = arith.constant 0 : index
    %40 = vector.load %arg2[%c0_4, %c0_5] : memref<82x112xf32, #tpu.memory_space<vmem>>, vector<82x112xf32>
    %cst = arith.constant dense<0.000000e+00> : vector<16x112xf32>
    %41 = tpu.matmul %1, %40, %cst {dimension_numbers = #tpu.dot_dimension_numbers<[1], [0], [0], [1], [0, 0, 1, 1], [], []>} : vector<16x82xf32>, vector<82x112xf32>, vector<16x112xf32> -> vector<16x112xf32>
    %c0_6 = arith.constant 0 : index
    %c0_7 = arith.constant 0 : index
    %42 = vector.load %arg3[%c0_6, %c0_7] : memref<1x112xf32, #tpu.memory_space<vmem>>, vector<1x112xf32>
    %43 = vector.broadcast %42 : vector<1x112xf32> to vector<16x112xf32>
    %44 = arith.addf %41, %43 : vector<16x112xf32>
    %cst_8 = arith.constant 0.000000e+00 : f32
    %45 = vector.broadcast %cst_8 : f32 to vector<16x112xf32>
    %46 = arith.maximumf %44, %45 : vector<16x112xf32>
    %c0_9 = arith.constant 0 : index
    %c0_10 = arith.constant 0 : index
    %47 = vector.load %arg4[%c0_9, %c0_10] : memref<112x120xf32, #tpu.memory_space<vmem>>, vector<112x120xf32>
    %cst_11 = arith.constant dense<0.000000e+00> : vector<16x120xf32>
    %48 = tpu.matmul %46, %47, %cst_11 {dimension_numbers = #tpu.dot_dimension_numbers<[1], [0], [0], [1], [0, 0, 1, 1], [], []>} : vector<16x112xf32>, vector<112x120xf32>, vector<16x120xf32> -> vector<16x120xf32>
    %c0_12 = arith.constant 0 : index
    %c0_13 = arith.constant 0 : index
    %49 = vector.load %arg5[%c0_12, %c0_13] : memref<1x120xf32, #tpu.memory_space<vmem>>, vector<1x120xf32>
    %50 = vector.broadcast %49 : vector<1x120xf32> to vector<16x120xf32>
    %51 = arith.addf %48, %50 : vector<16x120xf32>
    %cst_14 = arith.constant 0.000000e+00 : f32
    %52 = vector.broadcast %cst_14 : f32 to vector<16x120xf32>
    %53 = arith.maximumf %51, %52 : vector<16x120xf32>
    %54 = arith.addf %53, %39 : vector<16x120xf32>
    %c0_15 = arith.constant 0 : index
    %c0_16 = arith.constant 0 : index
    %55 = vector.load %arg7[%c0_15, %c0_16] : memref<120x32xf32, #tpu.memory_space<vmem>>, vector<120x32xf32>
    %cst_17 = arith.constant dense<0.000000e+00> : vector<16x32xf32>
    %56 = tpu.matmul %54, %55, %cst_17 {dimension_numbers = #tpu.dot_dimension_numbers<[1], [0], [0], [1], [0, 0, 1, 1], [], []>} : vector<16x120xf32>, vector<120x32xf32>, vector<16x32xf32> -> vector<16x32xf32>
    %c0_18 = arith.constant 0 : index
    %c0_19 = arith.constant 0 : index
    %57 = vector.load %arg8[%c0_18, %c0_19] : memref<1x32xf32, #tpu.memory_space<vmem>>, vector<1x32xf32>
    %58 = vector.broadcast %57 : vector<1x32xf32> to vector<16x32xf32>
    %59 = arith.addf %56, %58 : vector<16x32xf32>
    %cst_20 = arith.constant 0.000000e+00 : f32
    %60 = vector.broadcast %cst_20 : f32 to vector<16x32xf32>
    %61 = arith.maximumf %59, %60 : vector<16x32xf32>
    %c0_21 = arith.constant 0 : index
    %c0_22 = arith.constant 0 : index
    %62 = vector.load %arg9[%c0_21, %c0_22] : memref<32x32xf32, #tpu.memory_space<vmem>>, vector<32x32xf32>
    %cst_23 = arith.constant dense<0.000000e+00> : vector<16x32xf32>
    %63 = tpu.matmul %61, %62, %cst_23 {dimension_numbers = #tpu.dot_dimension_numbers<[1], [0], [0], [1], [0, 0, 1, 1], [], []>} : vector<16x32xf32>, vector<32x32xf32>, vector<16x32xf32> -> vector<16x32xf32>
    %c0_24 = arith.constant 0 : index
    %c0_25 = arith.constant 0 : index
    %64 = vector.load %arg10[%c0_24, %c0_25] : memref<1x32xf32, #tpu.memory_space<vmem>>, vector<1x32xf32>
    %65 = vector.broadcast %64 : vector<1x32xf32> to vector<16x32xf32>
    %66 = arith.addf %63, %65 : vector<16x32xf32>
    %cst_26 = arith.constant 0.000000e+00 : f32
    %67 = vector.broadcast %cst_26 : f32 to vector<16x32xf32>
    %68 = arith.maximumf %66, %67 : vector<16x32xf32>
    %c0_27 = arith.constant 0 : index
    %c0_28 = arith.constant 0 : index
    %69 = vector.load %arg11[%c0_27, %c0_28] : memref<2x32xf32, #tpu.memory_space<vmem>>, vector<2x32xf32>
    %70 = vector.extract_strided_slice %68 {offsets = [0, 0], sizes = [8, 32], strides = [1, 1]} : vector<16x32xf32> to vector<8x32xf32>
    %71 = vector.extract_strided_slice %69 {offsets = [0, 0], sizes = [1, 32], strides = [1, 1]} : vector<2x32xf32> to vector<1x32xf32>
    %72 = vector.broadcast %71 : vector<1x32xf32> to vector<8x32xf32>
    %73 = arith.mulf %70, %72 : vector<8x32xf32>
    %74 = vector.extract_strided_slice %68 {offsets = [8, 0], sizes = [8, 32], strides = [1, 1]} : vector<16x32xf32> to vector<8x32xf32>
    %75 = vector.extract_strided_slice %69 {offsets = [1, 0], sizes = [1, 32], strides = [1, 1]} : vector<2x32xf32> to vector<1x32xf32>
    %76 = vector.broadcast %75 : vector<1x32xf32> to vector<8x32xf32>
    %77 = arith.mulf %74, %76 : vector<8x32xf32>
    %78 = arith.addf %73, %77 : vector<8x32xf32>
    %cst_29 = arith.constant dense<0.000000e+00> : vector<8xf32>
    %79 = vector.multi_reduction <add>, %78, %cst_29 [1] : vector<8x32xf32> to vector<8xf32>
    %80 = vector.shape_cast %79 : vector<8xf32> to vector<8x1xf32>
    %c0_30 = arith.constant 0 : index
    %c0_31 = arith.constant 0 : index
    %81 = vector.load %arg12[%c0_30, %c0_31] : memref<1x1xf32, #tpu.memory_space<vmem>>, vector<1x1xf32>
    %82 = vector.broadcast %81 : vector<1x1xf32> to vector<8x1xf32>
    %83 = arith.addf %80, %82 : vector<8x1xf32>
    %cst_32 = arith.constant 0.000000e+00 : f32
    %84 = vector.broadcast %cst_32 : f32 to vector<8x1xf32>
    %85 = arith.maximumf %83, %84 : vector<8x1xf32>
    %c0_33 = arith.constant 0 : index
    %c0_34 = arith.constant 0 : index
    %86 = vector.load %arg13[%c0_33, %c0_34] : memref<1x1xf32, #tpu.memory_space<vmem>>, vector<1x1xf32>
    %87 = vector.broadcast %86 : vector<1x1xf32> to vector<8x1xf32>
    %88 = arith.mulf %85, %87 : vector<8x1xf32>
    %c0_35 = arith.constant 0 : index
    %c0_36 = arith.constant 0 : index
    %89 = vector.load %arg14[%c0_35, %c0_36] : memref<1x1xf32, #tpu.memory_space<vmem>>, vector<1x1xf32>
    %90 = vector.broadcast %89 : vector<1x1xf32> to vector<8x1xf32>
    %91 = arith.addf %88, %90 : vector<8x1xf32>
    %cst_37 = arith.constant 0.000000e+00 : f32
    %92 = vector.broadcast %cst_37 : f32 to vector<8x1xf32>
    %93 = arith.maximumf %91, %92 : vector<8x1xf32>
    %c0_38 = arith.constant 0 : index
    %c0_39 = arith.constant 0 : index
    %94 = vector.load %arg15[%c0_38, %c0_39] : memref<8x1xf32, #tpu.memory_space<vmem>>, vector<8x1xf32>
    tpu.vector_store %arg15[%c0_38, %c0_39], %93 {strides = array<i32>} : memref<8x1xf32, #tpu.memory_space<vmem>>, vector<8x1xf32>,
    return
  }
  func.func @transform_0(%arg0: i32) -> (i32, i32, i32) {
    %c0_i32 = arith.constant 0 : i32
    %c0_i32_0 = arith.constant 0 : i32
    %c0_i32_1 = arith.constant 0 : i32
    return %c0_i32, %arg0, %c0_i32_0 : i32, i32, i32
  }
  func.func @transform_1(%arg0: i32) -> (i32, i32) {
    %c0_i32 = arith.constant 0 : i32
    %c0_i32_0 = arith.constant 0 : i32
    %c0_i32_1 = arith.constant 0 : i32
    return %c0_i32, %c0_i32_0 : i32, i32
  }
  func.func @transform_2(%arg0: i32) -> (i32, i32) {
    %c0_i32 = arith.constant 0 : i32
    %c0_i32_0 = arith.constant 0 : i32
    %c0_i32_1 = arith.constant 0 : i32
    return %c0_i32, %c0_i32_0 : i32, i32
  }
  func.func @transform_3(%arg0: i32) -> (i32, i32) {
    %c0_i32 = arith.constant 0 : i32
    %c0_i32_0 = arith.constant 0 : i32
    %c0_i32_1 = arith.constant 0 : i32
    return %c0_i32, %c0_i32_0 : i32, i32
  }
  func.func @transform_4(%arg0: i32) -> (i32, i32) {
    %c0_i32 = arith.constant 0 : i32
    %c0_i32_0 = arith.constant 0 : i32
    %c0_i32_1 = arith.constant 0 : i32
    return %c0_i32, %c0_i32_0 : i32, i32
  }
  func.func @transform_5(%arg0: i32) -> (i32, i32) {
    %c0_i32 = arith.constant 0 : i32
    %c0_i32_0 = arith.constant 0 : i32
    %c0_i32_1 = arith.constant 0 : i32
    return %c0_i32, %c0_i32_0 : i32, i32
  }
  func.func @transform_6(%arg0: i32) -> (i32, i32) {
    %c0_i32 = arith.constant 0 : i32
    %c0_i32_0 = arith.constant 0 : i32
    %c0_i32_1 = arith.constant 0 : i32
    return %c0_i32, %c0_i32_0 : i32, i32
  }
  func.func @transform_7(%arg0: i32) -> (i32, i32) {
    %c0_i32 = arith.constant 0 : i32
    %c0_i32_0 = arith.constant 0 : i32
    %c0_i32_1 = arith.constant 0 : i32
    return %c0_i32, %c0_i32_0 : i32, i32
  }
  func.func @transform_8(%arg0: i32) -> (i32, i32) {
    %c0_i32 = arith.constant 0 : i32
    %c0_i32_0 = arith.constant 0 : i32
    %c0_i32_1 = arith.constant 0 : i32
    return %c0_i32, %c0_i32_0 : i32, i32
  }
  func.func @transform_9(%arg0: i32) -> (i32, i32) {
    %c0_i32 = arith.constant 0 : i32
    %c0_i32_0 = arith.constant 0 : i32
    %c0_i32_1 = arith.constant 0 : i32
    return %c0_i32, %c0_i32_0 : i32, i32
  }
  func.func @transform_10(%arg0: i32) -> (i32, i32) {
    %c0_i32 = arith.constant 0 : i32
    %c0_i32_0 = arith.constant 0 : i32
    %c0_i32_1 = arith.constant 0 : i32
    return %c0_i32, %c0_i32_0 : i32, i32
  }
  func.func @transform_11(%arg0: i32) -> (i32, i32) {
    %c0_i32 = arith.constant 0 : i32
    %c0_i32_0 = arith.constant 0 : i32
    %c0_i32_1 = arith.constant 0 : i32
    return %c0_i32, %c0_i32_0 : i32, i32
  }
  func.func @transform_12(%arg0: i32) -> (i32, i32) {
    %c0_i32 = arith.constant 0 : i32
    %c0_i32_0 = arith.constant 0 : i32
    %c0_i32_1 = arith.constant 0 : i32
    return %c0_i32, %c0_i32_0 : i32, i32
  }
  func.func @transform_13(%arg0: i32) -> (i32, i32) {
    %c0_i32 = arith.constant 0 : i32
    %c0_i32_0 = arith.constant 0 : i32
    %c0_i32_1 = arith.constant 0 : i32
    return %c0_i32, %c0_i32_0 : i32, i32
  }
  func.func @transform_14(%arg0: i32) -> (i32, i32) {
    %c0_i32 = arith.constant 0 : i32
    %c0_i32_0 = arith.constant 0 : i32
    return %arg0, %c0_i32 : i32, i32
  }
}

</mosaic_0001>

<llo_original>
// kernel: tpu_custom_call.1
$region0: #{tpu_custom_call.1}
  #allocation0 [shape = 'u32[]', space=smem, size = 0x4, offset = 0x4, fixed_abs, tag = 'smem constant byte address 0x4 - core index']
  #allocation1 [shape = 'u32[72,128]{1,0:T(1,128)}', space=vmem, size = 0x9000, scoped, tag = 'internal scratch']
  #allocation2 [shape = 'f32[1,1]{1,0:T(1,128)S(1)}', space=vmem, size = 0x200, scoped, tag = 'scoped memory for tpu_custom_call.1']
  #allocation3 [shape = 'f32[1,1]{1,0:T(1,128)S(1)}', space=vmem, size = 0x200, scoped, tag = 'scoped memory for tpu_custom_call.1']
  #allocation4 [shape = 'f32[1,1]{1,0:T(1,128)S(1)}', space=vmem, size = 0x200, scoped, tag = 'scoped memory for tpu_custom_call.1']
  %s0 = inlined_call_operand.vmem [shape: f32[2,8,82], index: 0, kind: input, shape index: {}]
  %s1 = inlined_call_operand.hbm [shape: f32[82,112], index: 1, kind: input, shape index: {}]
  %s2 = inlined_call_operand.hbm [shape: f32[1,112], index: 2, kind: input, shape index: {}]
  %s3 = inlined_call_operand.vmem [shape: f32[112,120], index: 3, kind: input, shape index: {}]
  %s4 = inlined_call_operand.vmem [shape: f32[1,120], index: 4, kind: input, shape index: {}]
  %s5 = inlined_call_operand.hbm [shape: f32[4,120], index: 5, kind: input, shape index: {}]
  %s6 = inlined_call_operand.vmem [shape: f32[120,32], index: 6, kind: input, shape index: {}]
  %s7 = inlined_call_operand.hbm [shape: f32[1,32], index: 7, kind: input, shape index: {}]
  %s8 = inlined_call_operand.vmem [shape: f32[32,32], index: 8, kind: input, shape index: {}]
  %s9 = inlined_call_operand.vmem [shape: f32[1,32], index: 9, kind: input, shape index: {}]
  %s10 = inlined_call_operand.vmem [shape: f32[2,32], index: 10, kind: input, shape index: {}]
  %s11 = inlined_call_operand.<no memory space> [shape: f32[1,1], index: 11, kind: input, shape index: {}]
  %s12 = inlined_call_operand.<no memory space> [shape: f32[1,1], index: 12, kind: input, shape index: {}]
  %s13 = inlined_call_operand.<no memory space> [shape: f32[1,1], index: 13, kind: input, shape index: {}]
  %s14 = inlined_call_operand.vmem [shape: f32[8,1], index: 14, kind: output, shape index: {}]
  %s15 = sld [smem:[#allocation0]]
  $region82: #{tpu_custom_call.1} parent=0
    _
  %s17 = ssub.s32 1, %s15
  %s18 = scalar_select 0, %s17, %s15
  %v19 = vstv %s11
  %20 = vst [vmem:[#allocation2] sm:$0x1] %v19
  %v21 = vstv %s12
  %22 = vst [vmem:[#allocation3] sm:$0x1] %v21
  %v23 = vstv %s13
  %24 = vst [vmem:[#allocation4] sm:$0x1] %v23
  $region1: #{tpu_custom_call.1} parent=0
    #allocation5 [shape = 'u8[45056]{0}', space=vmem, size = 0xb000, scoped, tag = 'input window, operand 1, single buffered']
    #allocation6 [shape = 's32[1]{0}', space=sflag, size = 0x4, scoped, tag = 'scoped memory for tpu_custom_call.1']
    #allocation7 [shape = 'u8[512]{0}', space=vmem, size = 0x400, scoped, tag = 'input window, operand 2, single buffered']
    #allocation8 [shape = 's32[1]{0}', space=sflag, size = 0x4, scoped, tag = 'scoped memory for tpu_custom_call.1']
    #allocation9 [shape = 'u8[2048]{0}', space=vmem, size = 0x800, scoped, tag = 'input window, operand 5, single buffered']
    #allocation10 [shape = 'u8[512]{0}', space=vmem, size = 0x400, scoped, tag = 'input window, operand 7, single buffered']
    #allocation11 [shape = 's32[1]{0}', space=sflag, size = 0x4, scoped, tag = 'scoped memory for tpu_custom_call.1']
    %25 = vsyncpa [#allocation6], 0
    %26 = vsyncpa [#allocation8], 0
    %27 = vsyncpa [#allocation11], 0
    // Predicated region
    $region2: #{tpu_custom_call.1} parent=1 // pred_check
      _
    $region3: #{tpu_custom_call.1} parent=1 // pred_check_branch
      %29 = sbr.rel (0) target = $region5
    $region4: #{tpu_custom_call.1} parent=1 // pred_region
      _
    $region5: #{tpu_custom_call.1} parent=1 // pred_fallthru
      _
    // Predicated region
    $region6: #{tpu_custom_call.1} parent=1 // pred_check
      _
    $region7: #{tpu_custom_call.1} parent=1 // pred_check_branch
      %31 = sbr.rel (0) target = $region9
    $region8: #{tpu_custom_call.1} parent=1 // pred_region
      %33 = vsyncadd [#allocation6], 0
      %s34 = sshll.u32 %s1, 4
      %s35 = int_to_ptr.hbm [resolvable:$true] %s34
      %s36 = sshll.u32 [#allocation5], 4
      %s37 = int_to_ptr.vmem [resolvable:$true] %s36
      %42 = dma.hbm_to_vmem [thread:$0]  %s35, 1408, %s37, [#allocation6], 128, 128, 8
    $region9: #{tpu_custom_call.1} parent=1 // pred_fallthru
      _
    // Predicated region
    $region10: #{tpu_custom_call.1} parent=1 // pred_check
      _
    $region11: #{tpu_custom_call.1} parent=1 // pred_check_branch
      %44 = sbr.rel (0) target = $region13
    $region12: #{tpu_custom_call.1} parent=1 // pred_region
      %46 = vsyncadd [#allocation8], 0
      %s48 = sshll.u32 %s2, 4
      %s49 = int_to_ptr.hbm [resolvable:$true] %s48
      %s50 = sshll.u32 [#allocation7], 4
      %s51 = int_to_ptr.vmem [resolvable:$true] %s50
      %53 = dma.hbm_to_vmem [thread:$0]  %s49, 16, %s51, [#allocation8]
    $region13: #{tpu_custom_call.1} parent=1 // pred_fallthru
      _
    // Predicated region
    $region14: #{tpu_custom_call.1} parent=1 // pred_check
      _
    $region15: #{tpu_custom_call.1} parent=1 // pred_check_branch
      %55 = sbr.rel (0) target = $region17
    $region16: #{tpu_custom_call.1} parent=1 // pred_region
      _
    $region17: #{tpu_custom_call.1} parent=1 // pred_fallthru
      _
    // Predicated region
    $region18: #{tpu_custom_call.1} parent=1 // pred_check
      _
    $region19: #{tpu_custom_call.1} parent=1 // pred_check_branch
      %57 = sbr.rel (0) target = $region21
    $region20: #{tpu_custom_call.1} parent=1 // pred_region
      _
    $region21: #{tpu_custom_call.1} parent=1 // pred_fallthru
      _
    // Predicated region
    $region22: #{tpu_custom_call.1} parent=1 // pred_check
      _
    $region23: #{tpu_custom_call.1} parent=1 // pred_check_branch
      %59 = sbr.rel (0) target = $region25
    $region24: #{tpu_custom_call.1} parent=1 // pred_region
      %61 = vsyncadd [#allocation8], 0
      %s63 = sshll.u32 %s5, 4
      %s64 = int_to_ptr.hbm [resolvable:$true] %s63
      %s65 = sshll.u32 [#allocation9], 4
      %s66 = int_to_ptr.vmem [resolvable:$true] %s65
      %68 = dma.hbm_to_vmem [thread:$0]  %s64, 64, %s66, [#allocation8]
    $region25: #{tpu_custom_call.1} parent=1 // pred_fallthru
      _
    // Predicated region
    $region26: #{tpu_custom_call.1} parent=1 // pred_check
      _
    $region27: #{tpu_custom_call.1} parent=1 // pred_check_branch
      %70 = sbr.rel (0) target = $region29
    $region28: #{tpu_custom_call.1} parent=1 // pred_region
      _
    $region29: #{tpu_custom_call.1} parent=1 // pred_fallthru
      _
    // Predicated region
    $region30: #{tpu_custom_call.1} parent=1 // pred_check
      _
    $region31: #{tpu_custom_call.1} parent=1 // pred_check_branch
      %72 = sbr.rel (0) target = $region33
    $region32: #{tpu_custom_call.1} parent=1 // pred_region
      %74 = vsyncadd [#allocation11], 0
      %s76 = sshll.u32 %s7, 4
      %s77 = int_to_ptr.hbm [resolvable:$true] %s76
      %s78 = sshll.u32 [#allocation10], 4
      %s79 = int_to_ptr.vmem [resolvable:$true] %s78
      %81 = dma.hbm_to_vmem [thread:$0]  %s77, 16, %s79, [#allocation11]
    $region33: #{tpu_custom_call.1} parent=1 // pred_fallthru
      _
    // Predicated region
    $region34: #{tpu_custom_call.1} parent=1 // pred_check
      _
    $region35: #{tpu_custom_call.1} parent=1 // pred_check_branch
      %83 = sbr.rel (0) target = $region37
    $region36: #{tpu_custom_call.1} parent=1 // pred_region
      _
    $region37: #{tpu_custom_call.1} parent=1 // pred_fallthru
      _
    // Predicated region
    $region38: #{tpu_custom_call.1} parent=1 // pred_check
      _
    $region39: #{tpu_custom_call.1} parent=1 // pred_check_branch
      %85 = sbr.rel (0) target = $region41
    $region40: #{tpu_custom_call.1} parent=1 // pred_region
      _
    $region41: #{tpu_custom_call.1} parent=1 // pred_fallthru
      _
    // Predicated region
    $region42: #{tpu_custom_call.1} parent=1 // pred_check
      _
    $region43: #{tpu_custom_call.1} parent=1 // pred_check_branch
      %87 = sbr.rel (0) target = $region45
    $region44: #{tpu_custom_call.1} parent=1 // pred_region
      _
    $region45: #{tpu_custom_call.1} parent=1 // pred_fallthru
      _
    // Predicated region
    $region46: #{tpu_custom_call.1} parent=1 // pred_check
      _
    $region47: #{tpu_custom_call.1} parent=1 // pred_check_branch
      %89 = sbr.rel (0) target = $region49
    $region48: #{tpu_custom_call.1} parent=1 // pred_region
      _
    $region49: #{tpu_custom_call.1} parent=1 // pred_fallthru
      _
    // Predicated region
    $region50: #{tpu_custom_call.1} parent=1 // pred_check
      _
    $region51: #{tpu_custom_call.1} parent=1 // pred_check_branch
      %91 = sbr.rel (0) target = $region53
    $region52: #{tpu_custom_call.1} parent=1 // pred_region
      _
    $region53: #{tpu_custom_call.1} parent=1 // pred_fallthru
      _
    // Predicated region
    $region54: #{tpu_custom_call.1} parent=1 // pred_check
      _
    $region55: #{tpu_custom_call.1} parent=1 // pred_check_branch
      %93 = sbr.rel (0) target = $region57
    $region56: #{tpu_custom_call.1} parent=1 // pred_region
      _
    $region57: #{tpu_custom_call.1} parent=1 // pred_fallthru
      _
    // Predicated region
    $region58: #{tpu_custom_call.1} parent=1 // pred_check
      _
    $region59: #{tpu_custom_call.1} parent=1 // pred_check_branch
      %95 = sbr.rel (0) target = $region61
    $region60: #{tpu_custom_call.1} parent=1 // pred_region
      %97 = dma.done [#allocation6], 1408
    $region61: #{tpu_custom_call.1} parent=1 // pred_fallthru
      _
    // Predicated region
    $region62: #{tpu_custom_call.1} parent=1 // pred_check
      _
    $region63: #{tpu_custom_call.1} parent=1 // pred_check_branch
      %99 = sbr.rel (0) target = $region65
    $region64: #{tpu_custom_call.1} parent=1 // pred_region
      %101 = dma.done [#allocation8], 16
    $region65: #{tpu_custom_call.1} parent=1 // pred_fallthru
      _
    // Predicated region
    $region66: #{tpu_custom_call.1} parent=1 // pred_check
      _
    $region67: #{tpu_custom_call.1} parent=1 // pred_check_branch
      %103 = sbr.rel (0) target = $region69
    $region68: #{tpu_custom_call.1} parent=1 // pred_region
      %105 = dma.done [#allocation8], 64
    $region69: #{tpu_custom_call.1} parent=1 // pred_fallthru
      _
    // Predicated region
    $region70: #{tpu_custom_call.1} parent=1 // pred_check
      _
    $region71: #{tpu_custom_call.1} parent=1 // pred_check_branch
      %107 = sbr.rel (0) target = $region73
    $region72: #{tpu_custom_call.1} parent=1 // pred_region
      %109 = dma.done [#allocation11], 16
    $region73: #{tpu_custom_call.1} parent=1 // pred_fallthru
      _
    %v110 = vld [vmem:[%s0] sm:$0xff]
    %v111 = vld [vmem:[%s0 + $0x8] sm:$0xff]
    %v112 = vcvt.f32.s32.to.zero.pseudo %v110
    %v113 = vcvt.f32.s32.to.zero.pseudo %v111
    %v114 = vld [vmem:[#allocation9] sm:$0xf]
    %vm115 = vcmp.eq.s32.totalorder %v112, 0
    %vm116 = vcmp.eq.s32.totalorder %v113, 0
    %v117 = vsel %vm115, 1, 0
    %v118 = vsel %vm116, 1, 0
    %v119 = vcvt.s32.f32 %v117
    %v120 = vcvt.s32.f32 %v118
    %122 = vset.pattern.permute.xlu0 33
    %123 = vperm.xlu0 %122, %v119
    %v124 = vpop.permute.xlu0 %123
    %127 = vset.pattern.permute.xlu0 33
    %128 = vperm.xlu0 %127, %v120
    %v129 = vpop.permute.xlu0 %128
    %v131 = vperm.slane %v114, 0
    %v132 = vmul.f32 %v124, %v131
    %v133 = vmul.f32 %v129, %v131
    %vm134 = vcmp.eq.s32.totalorder %v112, 1
    %vm135 = vcmp.eq.s32.totalorder %v113, 1
    %v136 = vsel %vm134, 1, 0
    %v137 = vsel %vm135, 1, 0
    %v138 = vcvt.s32.f32 %v136
    %v139 = vcvt.s32.f32 %v137
    %141 = vset.pattern.permute.xlu0 33
    %142 = vperm.xlu0 %141, %v138
    %v143 = vpop.permute.xlu0 %142
    %146 = vset.pattern.permute.xlu0 33
    %147 = vperm.xlu0 %146, %v139
    %v148 = vpop.permute.xlu0 %147
    %v150 = vperm.slane %v114, 1
    %v151 = vmul.f32 %v143, %v150
    %v152 = vmul.f32 %v148, %v150
    %v153 = vadd.f32 %v132, %v151
    %v154 = vadd.f32 %v133, %v152
    %vm155 = vcmp.eq.s32.totalorder %v112, 2
    %vm156 = vcmp.eq.s32.totalorder %v113, 2
    %v157 = vsel %vm155, 1, 0
    %v158 = vsel %vm156, 1, 0
    %v159 = vcvt.s32.f32 %v157
    %v160 = vcvt.s32.f32 %v158
    %162 = vset.pattern.permute.xlu0 33
    %163 = vperm.xlu0 %162, %v159
    %v164 = vpop.permute.xlu0 %163
    %167 = vset.pattern.permute.xlu0 33
    %168 = vperm.xlu0 %167, %v160
    %v169 = vpop.permute.xlu0 %168
    %v171 = vperm.slane %v114, 2
    %v172 = vmul.f32 %v164, %v171
    %v173 = vmul.f32 %v169, %v171
    %v174 = vadd.f32 %v153, %v172
    %v175 = vadd.f32 %v154, %v173
    %vm176 = vcmp.eq.s32.totalorder %v112, 3
    %vm177 = vcmp.eq.s32.totalorder %v113, 3
    %v178 = vsel %vm176, 1, 0
    %v179 = vsel %vm177, 1, 0
    %v180 = vcvt.s32.f32 %v178
    %v181 = vcvt.s32.f32 %v179
    %183 = vset.pattern.permute.xlu0 33
    %184 = vperm.xlu0 %183, %v180
    %v185 = vpop.permute.xlu0 %184
    %188 = vset.pattern.permute.xlu0 33
    %189 = vperm.xlu0 %188, %v181
    %v190 = vpop.permute.xlu0 %189
    %v192 = vperm.slane %v114, 3
    %v193 = vmul.f32 %v185, %v192
    %v194 = vmul.f32 %v190, %v192
    %v195 = vadd.f32 %v174, %v193
    %v196 = vadd.f32 %v175, %v194
    %v197 = vld [vmem:[#allocation5] sm:$0xff]
    %v198 = vld [vmem:[#allocation5 + $0x8] sm:$0xff]
    %v199 = vld [vmem:[#allocation5 + $0x10] sm:$0xff]
    %v200 = vld [vmem:[#allocation5 + $0x18] sm:$0xff]
    %v201 = vld [vmem:[#allocation5 + $0x20] sm:$0xff]
    %v202 = vld [vmem:[#allocation5 + $0x28] sm:$0xff]
    %v203 = vld [vmem:[#allocation5 + $0x30] sm:$0xff]
    %v204 = vld [vmem:[#allocation5 + $0x38] sm:$0xff]
    %v205 = vld [vmem:[#allocation5 + $0x40] sm:$0xff]
    %v206 = vld [vmem:[#allocation5 + $0x48] sm:$0xff]
    %v207 = vld [vmem:[#allocation5 + $0x50] sm:$0x3]
    %v208 = vld [vmem:[#allocation7] sm:$0x1]
    %v210 = vperm.slane %v208, 0
    %vm212 = vcmask 670720
    %v214 = vsel %vm212, %v110, 0
    %v217 = vsel %vm212, %v111, 0
    %vm219 = vcmask 1041408
    %v221 = vsel %vm219, %v207, 0
    %223 = vmatpush.msra.mxu0 0.0
    %224 = vmatpush.msra.mxu0 0.0
    %225 = vmatpush.msra.mxu0 0.0
    %226 = vmatpush.msra.mxu0 0.0
    %227 = vmatpush.msra.mxu0 0.0
    %228 = vmatpush.msra.mxu0 %v221
    %229 = vmatpush.msra.mxu0 %v206
    %230 = vmatpush.msra.mxu0 %v205
    %231 = vmatpush.msra.mxu0 %v204
    %232 = vmatpush.msra.mxu0 %v203
    %233 = vmatpush.msra.mxu0 %v202
    %234 = vmatpush.msra.mxu0 %v201
    %235 = vmatpush.msra.mxu0 %v200
    %236 = vmatpush.msra.mxu0 %v199
    %237 = vmatpush.msra.mxu0 %v198
    %238 = vmatpush.msra.mxu0 %v197
    %239 = vmatmul.f32.gmra.mxu0 %v214
    %v240 = vpop.f32.mrf.mxu0
    %v241 = vadd.f32 %v210, %v240
    %242 = vmatmul.f32.gmra.mxu0 %v217
    %v243 = vpop.f32.mrf.mxu0
    %v244 = vadd.f32 %v210, %v243
    %245 = vdwg.mxu0
    %v246 = vmax.f32 %v241, 0.0
    %v247 = vmax.f32 %v244, 0.0
    %v248 = vld [vmem:[%s3] sm:$0xff]
    %v249 = vld [vmem:[%s3 + $0x8] sm:$0xff]
    %v250 = vld [vmem:[%s3 + $0x10] sm:$0xff]
    %v251 = vld [vmem:[%s3 + $0x18] sm:$0xff]
    %v252 = vld [vmem:[%s3 + $0x20] sm:$0xff]
    %v253 = vld [vmem:[%s3 + $0x28] sm:$0xff]
    %v254 = vld [vmem:[%s3 + $0x30] sm:$0xff]
    %v255 = vld [vmem:[%s3 + $0x38] sm:$0xff]
    %v256 = vld [vmem:[%s3 + $0x40] sm:$0xff]
    %v257 = vld [vmem:[%s3 + $0x48] sm:$0xff]
    %v258 = vld [vmem:[%s3 + $0x50] sm:$0xff]
    %v259 = vld [vmem:[%s3 + $0x58] sm:$0xff]
    %v260 = vld [vmem:[%s3 + $0x60] sm:$0xff]
    %v261 = vld [vmem:[%s3 + $0x68] sm:$0xff]
    %v262 = vld [vmem:[%s4] sm:$0x1]
    %v264 = vperm.slane %v262, 0
    %vm266 = vcmask 916480
    %v268 = vsel %vm266, %v246, 0
    %v271 = vsel %vm266, %v247, 0
    %273 = vmatpush.msra.mxu0 0.0
    %274 = vmatpush.msra.mxu0 0.0
    %275 = vmatpush.msra.mxu0 %v261
    %276 = vmatpush.msra.mxu0 %v260
    %277 = vmatpush.msra.mxu0 %v259
    %278 = vmatpush.msra.mxu0 %v258
    %279 = vmatpush.msra.mxu0 %v257
    %280 = vmatpush.msra.mxu0 %v256
    %281 = vmatpush.msra.mxu0 %v255
    %282 = vmatpush.msra.mxu0 %v254
    %283 = vmatpush.msra.mxu0 %v253
    %284 = vmatpush.msra.mxu0 %v252
    %285 = vmatpush.msra.mxu0 %v251
    %286 = vmatpush.msra.mxu0 %v250
    %287 = vmatpush.msra.mxu0 %v249
    %288 = vmatpush.msra.mxu0 %v248
    %289 = vmatmul.f32.gmra.mxu0 %v268
    %v290 = vpop.f32.mrf.mxu0
    %v291 = vadd.f32 %v264, %v290
    %292 = vmatmul.f32.gmra.mxu0 %v271
    %v293 = vpop.f32.mrf.mxu0
    %v294 = vadd.f32 %v264, %v293
    %295 = vdwg.mxu0
    %v296 = vmax.f32 %v291, 0.0
    %v297 = vmax.f32 %v294, 0.0
    %v298 = vadd.f32 %v296, %v195
    %v299 = vadd.f32 %v297, %v196
    %v300 = vld [vmem:[%s6] sm:$0xff]
    %v301 = vld [vmem:[%s6 + $0x8] sm:$0xff]
    %v302 = vld [vmem:[%s6 + $0x10] sm:$0xff]
    %v303 = vld [vmem:[%s6 + $0x18] sm:$0xff]
    %v304 = vld [vmem:[%s6 + $0x20] sm:$0xff]
    %v305 = vld [vmem:[%s6 + $0x28] sm:$0xff]
    %v306 = vld [vmem:[%s6 + $0x30] sm:$0xff]
    %v307 = vld [vmem:[%s6 + $0x38] sm:$0xff]
    %v308 = vld [vmem:[%s6 + $0x40] sm:$0xff]
    %v309 = vld [vmem:[%s6 + $0x48] sm:$0xff]
    %v310 = vld [vmem:[%s6 + $0x50] sm:$0xff]
    %v311 = vld [vmem:[%s6 + $0x58] sm:$0xff]
    %v312 = vld [vmem:[%s6 + $0x60] sm:$0xff]
    %v313 = vld [vmem:[%s6 + $0x68] sm:$0xff]
    %v314 = vld [vmem:[%s6 + $0x70] sm:$0xff]
    %v315 = vld [vmem:[#allocation10] sm:$0x1]
    %v317 = vperm.slane %v315, 0
    %vm319 = vcmask 982016
    %v321 = vsel %vm319, %v298, 0
    %v324 = vsel %vm319, %v299, 0
    %326 = vmatpush.msra.mxu0 0.0
    %327 = vmatpush.msra.mxu0 %v314
    %328 = vmatpush.msra.mxu0 %v313
    %329 = vmatpush.msra.mxu0 %v312
    %330 = vmatpush.msra.mxu0 %v311
    %331 = vmatpush.msra.mxu0 %v310
    %332 = vmatpush.msra.mxu0 %v309
    %333 = vmatpush.msra.mxu0 %v308
    %334 = vmatpush.msra.mxu0 %v307
    %335 = vmatpush.msra.mxu0 %v306
    %336 = vmatpush.msra.mxu0 %v305
    %337 = vmatpush.msra.mxu0 %v304
    %338 = vmatpush.msra.mxu0 %v303
    %339 = vmatpush.msra.mxu0 %v302
    %340 = vmatpush.msra.mxu0 %v301
    %341 = vmatpush.msra.mxu0 %v300
    %342 = vmatmul.f32.gmra.mxu0 %v321
    %v343 = vpop.f32.mrf.mxu0
    %v344 = vadd.f32 %v317, %v343
    %345 = vmatmul.f32.gmra.mxu0 %v324
    %v346 = vpop.f32.mrf.mxu0
    %v347 = vadd.f32 %v317, %v346
    %348 = vdwg.mxu0
    %v349 = vmax.f32 %v344, 0.0
    %v350 = vmax.f32 %v347, 0.0
    %v351 = vld [vmem:[%s8] sm:$0xff]
    %v352 = vld [vmem:[%s8 + $0x8] sm:$0xff]
    %v353 = vld [vmem:[%s8 + $0x10] sm:$0xff]
    %v354 = vld [vmem:[%s8 + $0x18] sm:$0xff]
    %v355 = vld [vmem:[%s9] sm:$0x1]
    %v357 = vperm.slane %v355, 0
    %vm359 = vcmask 261120
    %v361 = vsel %vm359, %v349, 0
    %v364 = vsel %vm359, %v350, 0
    %366 = vmatpush.msra.mxu0 0.0
    %367 = vmatpush.msra.mxu0 0.0
    %368 = vmatpush.msra.mxu0 0.0
    %369 = vmatpush.msra.mxu0 0.0
    %370 = vmatpush.msra.mxu0 0.0
    %371 = vmatpush.msra.mxu0 0.0
    %372 = vmatpush.msra.mxu0 0.0
    %373 = vmatpush.msra.mxu0 0.0
    %374 = vmatpush.msra.mxu0 0.0
    %375 = vmatpush.msra.mxu0 0.0
    %376 = vmatpush.msra.mxu0 0.0
    %377 = vmatpush.msra.mxu0 0.0
    %378 = vmatpush.msra.mxu0 %v354
    %379 = vmatpush.msra.mxu0 %v353
    %380 = vmatpush.msra.mxu0 %v352
    %381 = vmatpush.msra.mxu0 %v351
    %382 = vmatmul.f32.gmra.mxu0 %v361
    %v383 = vpop.f32.mrf.mxu0
    %v384 = vadd.f32 %v357, %v383
    %385 = vmatmul.f32.gmra.mxu0 %v364
    %v386 = vpop.f32.mrf.mxu0
    %v387 = vadd.f32 %v357, %v386
    %388 = vdwg.mxu0
    %v389 = vmax.f32 %v384, 0.0
    %v390 = vmax.f32 %v387, 0.0
    %v391 = vld [vmem:[%s10] sm:$0x3]
    %v392 = vperm.slane %v391, 0
    %v393 = vmul.f32 %v389, %v392
    %v394 = vperm.slane %v391, 1
    %v395 = vmul.f32 %v390, %v394
    %v396 = vadd.f32 %v393, %v395
    %v397 = vsel %vm359, %v396, 0.0
    %398 = vadd.xlane.f32.xlu0 %v397
    %v399 = vpop.xlane.xlu0 %398
    %v400 = vld [vmem:[#allocation2] sm:$0x1]
    %v402 = vperm.slane %v400, 0
    %v404 = vadd.f32 %v399, %v402
    %v405 = vmax.f32 %v404, 0.0
    %v406 = vld [vmem:[#allocation3] sm:$0x1]
    %v408 = vperm.slane %v406, 0
    %v410 = vmul.f32 %v405, %v408
    %v411 = vld [vmem:[#allocation4] sm:$0x1]
    %v413 = vperm.slane %v411, 0
    %v415 = vadd.f32 %v410, %v413
    %v416 = vmax.f32 %v415, 0.0
    %vm417 = vcmask 7168
    %418 = vst.msk [vmem:[%s14] sm:$0xff] %vm417, %v416
    // Predicated region
    $region74: #{tpu_custom_call.1} parent=1 // pred_check
      _
    $region75: #{tpu_custom_call.1} parent=1 // pred_check_branch
      %420 = sbr.rel (0) target = $region77
    $region76: #{tpu_custom_call.1} parent=1 // pred_region
      _
    $region77: #{tpu_custom_call.1} parent=1 // pred_fallthru
      _
    // Predicated region
    $region78: #{tpu_custom_call.1} parent=1 // pred_check
      _
    $region79: #{tpu_custom_call.1} parent=1 // pred_check_branch
      %422 = sbr.rel (0) target = $region81
    $region80: #{tpu_custom_call.1} parent=1 // pred_region
      _
    $region81: #{tpu_custom_call.1} parent=1 // pred_fallthru
      _
    %423 = vsyncpa [#allocation6], 1
    %424 = vsyncpa [#allocation8], 1
    %425 = vsyncpa [#allocation11], 1

</llo_original>
